<compile_context>
chip_gen: v7x
topology: tpu7x:2x2x1
jax: 0.10.0
libtpu: 0.0.40
codegen_flags: <defaults>
</compile_context>

<pallas_src>
import math

import jax
import jax.numpy as jnp
from jax.experimental import pallas as pl
from jax.experimental.pallas import tpu as pltpu


def _make_fusion_kernel(n_mods, compute_dtype):
    """Kernel producing one [tile, d_fused] block; whole chain stays in VMEM."""

    def kernel(*refs):
        mod_refs = refs[:n_mods]
        o_ref = refs[n_mods]
        tb = o_ref.shape[0]

        ones = jnp.ones((tb, 1), dtype=compute_dtype)

        def augmented(ref):
            # [tile, 1 + d] — the PyTorch torch.cat((ones, mod), dim=-1).
            return jnp.concatenate([ones, ref[...].astype(compute_dtype)],
                                   axis=-1)

        # Right-to-left Kronecker fold.  With augmented rows a_k = [1, mod_k]
        # the PyTorch row-major einsum+reshape chain equals
        #   a_1 (x) a_2 (x) ... (x) a_n        (per batch row)
        # and Kronecker products associate, so folding from the right keeps
        # the LARGE running dimension on the lane axis (lane-dense).  Each
        # level is one vectorized outer product + one reshape — no per-column
        # slices, no unaligned concats.
        r = augmented(mod_refs[-1])
        for m_ref in reversed(mod_refs[:-1]):
            a = augmented(m_ref)                         # [tb, 1+d] (small)
            da, dr = a.shape[-1], r.shape[-1]
            r = (a[:, :, None] * r[:, None, :]).reshape(tb, da * dr)

        # Single lane-dense full-block store → dense, unmasked HBM writeback.
        o_ref[...] = r.astype(o_ref.dtype)

    return kernel


def _vmem_budget_and_limit():
    """Generation-aware VMEM budget for block sizing + matching compiler limit."""
    try:
        cap = int(pltpu.get_tpu_info().vmem_capacity_bytes)
    except Exception:
        cap = 64 * 1024 * 1024            # assume the smallest (v7x: 64 MiB/TC)
    budget = min(cap // 2, 48 * 1024 * 1024)          # block working set
    limit = min((cap * 3) // 4, 100 * 1024 * 1024)    # scoped-VMEM ceiling
    return budget, limit


def _default_batch_tile(batch, feat_dims, d_fused, itemsize, compute_itemsize,
                        sublane, vmem_budget):
    """Largest batch tile that fits the VMEM budget, with >= 2 grid steps."""
    n = len(feat_dims)
    # Double-buffered input blocks + double-buffered output block.
    io_bytes = 2 * itemsize * (sum(feat_dims) + n) + 2 * itemsize * d_fused
    # In-kernel temporaries: the trace-time Python fold keeps every level's
    # running product live (d_fused + d_fused/(1+d_1) + ...), all in the
    # compute dtype, plus the cast copy made for the final store.
    tmp_elems, lvl = 0, d_fused
    for d in feat_dims:
        tmp_elems += lvl
        lvl //= (d + 1)
    tmp_bytes = compute_itemsize * tmp_elems + itemsize * d_fused
    bytes_per_row = io_bytes + tmp_bytes

    tile = vmem_budget // max(bytes_per_row, 1)
    tile = max(sublane, min(tile, 8192))
    tile = (tile // sublane) * sublane

    b_round = pl.cdiv(batch, sublane) * sublane
    # v7x has 2 TensorCores: keep the "parallel" batch axis at >= 2 grid steps
    # whenever the batch is large enough to split (negligible cost on v5e/v6e).
    if tile >= b_round and b_round >= 2 * sublane:
        tile = max(sublane, (b_round // (2 * sublane)) * sublane)
    return max(sublane, min(tile, b_round))


def tensor_fusion(modalities, *, batch_tile=None):
    """JAX/Pallas equivalent of the PyTorch TensorFusion.forward."""
    modalities = list(modalities)
    if len(modalities) == 1:
        return modalities[0]

    mod0 = modalities[0]
    nonfeature_size = mod0.shape[:-1]
    dtype = mod0.dtype

    # Flatten arbitrary leading dims into a single batch axis.
    mods2d = [jnp.asarray(m, dtype=dtype).reshape(-1, m.shape[-1])
              for m in modalities]
    batch = mods2d[0].shape[0]
    feat_dims = [int(m.shape[-1]) for m in mods2d]
    d_fused = math.prod(d + 1 for d in feat_dims)

    dt = jnp.dtype(dtype)
    itemsize = dt.itemsize
    # Fold low-precision floats in f32 and cast once on the final store.
    if jnp.issubdtype(dt, jnp.floating) and itemsize < 4:
        compute_dtype = jnp.float32
    else:
        compute_dtype = dtype
    compute_itemsize = jnp.dtype(compute_dtype).itemsize
    sublane = {4: 8, 2: 16, 1: 32}.get(itemsize, 8)

    vmem_budget, vmem_limit = _vmem_budget_and_limit()
    if batch_tile is None:
        batch_tile = _default_batch_tile(batch, feat_dims, d_fused, itemsize,
                                         compute_itemsize, sublane, vmem_budget)
    if batch_tile % sublane:
        raise ValueError(
            f"batch_tile={batch_tile} must be a multiple of {sublane} for "
            f"dtype {dtype}")

    # Pad ragged batches; padded rows are computed and sliced off afterwards.
    b_pad = pl.cdiv(batch, batch_tile) * batch_tile
    if b_pad != batch:
        mods2d = [jnp.pad(m, ((0, b_pad - batch), (0, 0))) for m in mods2d]

    grid = (b_pad // batch_tile,)
    in_specs = [pl.BlockSpec((batch_tile, d), lambda i: (i, 0))
                for d in feat_dims]
    out_spec = pl.BlockSpec((batch_tile, d_fused), lambda i: (i, 0))

    cost = pl.CostEstimate(
        flops=int(2 * b_pad * d_fused),
        transcendentals=0,
        bytes_accessed=int(itemsize * b_pad * (sum(feat_dims) + d_fused)),
    )

    fused = pl.pallas_call(
        _make_fusion_kernel(len(mods2d), compute_dtype),
        out_shape=jax.ShapeDtypeStruct((b_pad, d_fused), dtype),
        grid=grid,
        in_specs=in_specs,
        out_specs=out_spec,
        compiler_params=pltpu.CompilerParams(
            dimension_semantics=("parallel",),
            vmem_limit_bytes=int(vmem_limit)),
        cost_estimate=cost,
    )(*mods2d)

    return fused[:batch].reshape(*nonfeature_size, d_fused)


def tensor_fusion_reference(modalities):
    """Pure-JAX reference mirroring the PyTorch code."""
    modalities = list(modalities)
    if len(modalities) == 1:
        return modalities[0]
    mod0 = modalities[0]
    nonfeature_size = mod0.shape[:-1]
    m = jnp.concatenate(
        [jnp.ones((*nonfeature_size, 1), mod0.dtype), mod0], axis=-1)
    for mod in modalities[1:]:
        mod = jnp.concatenate(
            [jnp.ones((*nonfeature_size, 1), mod.dtype), mod], axis=-1)
        fused = jnp.einsum("...i,...j->...ij", m, mod)
        m = fused.reshape(*nonfeature_size, -1)
    return m


if __name__ == "__main__":
    key = jax.random.PRNGKey(0)
    k1, k2, k3 = jax.random.split(key, 3)

    # Trimodal, 2-D modalities: fused dim = (7+1)*(3+1)*(5+1) = 192.
    B = 16
    d1, d2, d3 = 7, 3, 5
    mod_a = jax.random.normal(k1, (B, d1), dtype=jnp.float32)
    mod_b = jax.random.normal(k2, (B, d2), dtype=jnp.float32)
    mod_c = jax.random.normal(k3, (B, d3), dtype=jnp.float32)
    modalities = [mod_a, mod_b, mod_c]

    out = jax.block_until_ready(tensor_fusion(modalities))
    ref = tensor_fusion_reference(modalities)
    assert out.shape == (B, (d1 + 1) * (d2 + 1) * (d3 + 1)), out.shape
    assert jnp.allclose(out, ref, atol=1e-5, rtol=1e-5), "mismatch (trimodal)"

    # Ragged batch + adaptive tile + bimodal path.
    k4, k5 = jax.random.split(k3)
    mod_x = jax.random.normal(k4, (13, 9), dtype=jnp.float32)
    mod_y = jax.random.normal(k5, (13, 4), dtype=jnp.float32)
    out2 = jax.block_until_ready(tensor_fusion([mod_x, mod_y]))
    ref2 = tensor_fusion_reference([mod_x, mod_y])
    assert out2.shape == (13, 10 * 5), out2.shape
    assert jnp.allclose(out2, ref2, atol=1e-5, rtol=1e-5), "mismatch (ragged)"

    # Arbitrary leading dims (flattened into the batch axis by the wrapper).
    k6, k7, k8 = jax.random.split(k5, 3)
    mod_p = jax.random.normal(k6, (2, 5, 3), dtype=jnp.float32)
    mod_q = jax.random.normal(k7, (2, 5, 2), dtype=jnp.float32)
    mod_r = jax.random.normal(k8, (2, 5, 4), dtype=jnp.float32)
    out3 = jax.block_until_ready(tensor_fusion([mod_p, mod_q, mod_r]))
    ref3 = tensor_fusion_reference([mod_p, mod_q, mod_r])
    assert out3.shape == (2, 5, 4 * 3 * 5), out3.shape
    assert jnp.allclose(out3, ref3, atol=1e-5, rtol=1e-5), "mismatch (3-D)"

    # bf16 path: the kernel folds in f32 and casts once on the final store.
    mods_bf16 = [m.astype(jnp.bfloat16) for m in modalities]
    out4 = jax.block_until_ready(tensor_fusion(mods_bf16))
    ref4 = tensor_fusion_reference(
        [m.astype(jnp.float32) for m in mods_bf16]).astype(jnp.bfloat16)
    assert out4.dtype == jnp.bfloat16 and out4.shape == ref4.shape
    assert jnp.allclose(out4.astype(jnp.float32), ref4.astype(jnp.float32),
                        atol=1e-2, rtol=1e-2), "mismatch (bf16)"

    print("KERNEL_OK")
</pallas_src>

<mosaic_0001>
module attributes {stable_mosaic.version = 11 : i64} {
  func.func @kernel(%arg0: i32, %arg1: memref<8x7xf32, #tpu.memory_space<vmem>>, %arg2: memref<8x3xf32, #tpu.memory_space<vmem>>, %arg3: memref<8x5xf32, #tpu.memory_space<vmem>>, %arg4: memref<8x192xf32, #tpu.memory_space<vmem>>) attributes {dimension_semantics = [#tpu.dimension_semantics<parallel>], iteration_bounds = array<i64: 2>, scalar_prefetch = 0 : i64, scratch_operands = 0 : i64, tpu.core_type = #tpu.core_type<tc>, window_params = [{transform_indices = @transform_0, window_bounds = array<i64: 8, 7>}, {transform_indices = @transform_1, window_bounds = array<i64: 8, 3>}, {transform_indices = @transform_2, window_bounds = array<i64: 8, 5>}, {transform_indices = @transform_3, window_bounds = array<i64: 8, 192>}]} {
    %cst = arith.constant 1.000000e+00 : f32
    %0 = vector.broadcast %cst : f32 to vector<8x1xf32>
    %c0 = arith.constant 0 : index
    %c0_0 = arith.constant 0 : index
    %1 = vector.load %arg3[%c0, %c0_0] : memref<8x5xf32, #tpu.memory_space<vmem>>, vector<8x5xf32>
    %2 = tpu.concatenate %0, %1 in 1 : vector<8x1xf32>, vector<8x5xf32> -> vector<8x6xf32>
    %c0_1 = arith.constant 0 : index
    %c0_2 = arith.constant 0 : index
    %3 = vector.load %arg2[%c0_1, %c0_2] : memref<8x3xf32, #tpu.memory_space<vmem>>, vector<8x3xf32>
    %4 = tpu.concatenate %0, %3 in 1 : vector<8x1xf32>, vector<8x3xf32> -> vector<8x4xf32>
    %5 = vector.shape_cast %4 : vector<8x4xf32> to vector<8x4x1xf32>
    %6 = vector.shape_cast %2 : vector<8x6xf32> to vector<8x1x6xf32>
    %7 = vector.broadcast %5 : vector<8x4x1xf32> to vector<8x4x6xf32>
    %8 = vector.broadcast %6 : vector<8x1x6xf32> to vector<8x4x6xf32>
    %9 = arith.mulf %7, %8 : vector<8x4x6xf32>
    %10 = vector.shape_cast %9 : vector<8x4x6xf32> to vector<8x24xf32>
    %c0_3 = arith.constant 0 : index
    %c0_4 = arith.constant 0 : index
    %11 = vector.load %arg1[%c0_3, %c0_4] : memref<8x7xf32, #tpu.memory_space<vmem>>, vector<8x7xf32>
    %12 = tpu.concatenate %0, %11 in 1 : vector<8x1xf32>, vector<8x7xf32> -> vector<8x8xf32>
    %13 = vector.shape_cast %12 : vector<8x8xf32> to vector<8x8x1xf32>
    %14 = vector.shape_cast %10 : vector<8x24xf32> to vector<8x1x24xf32>
    %15 = vector.broadcast %13 : vector<8x8x1xf32> to vector<8x8x24xf32>
    %16 = vector.broadcast %14 : vector<8x1x24xf32> to vector<8x8x24xf32>
    %17 = arith.mulf %15, %16 : vector<8x8x24xf32>
    %18 = vector.shape_cast %17 : vector<8x8x24xf32> to vector<8x192xf32>
    %c0_5 = arith.constant 0 : index
    %c0_6 = arith.constant 0 : index
    %19 = vector.load %arg4[%c0_5, %c0_6] : memref<8x192xf32, #tpu.memory_space<vmem>>, vector<8x192xf32>
    tpu.vector_store %arg4[%c0_5, %c0_6], %18 {strides = array<i32>} : memref<8x192xf32, #tpu.memory_space<vmem>>, vector<8x192xf32>,
    return
  }
  func.func @transform_0(%arg0: i32) -> (i32, i32) {
    %c0_i32 = arith.constant 0 : i32
    %c0_i32_0 = arith.constant 0 : i32
    return %arg0, %c0_i32 : i32, i32
  }
  func.func @transform_1(%arg0: i32) -> (i32, i32) {
    %c0_i32 = arith.constant 0 : i32
    %c0_i32_0 = arith.constant 0 : i32
    return %arg0, %c0_i32 : i32, i32
  }
  func.func @transform_2(%arg0: i32) -> (i32, i32) {
    %c0_i32 = arith.constant 0 : i32
    %c0_i32_0 = arith.constant 0 : i32
    return %arg0, %c0_i32 : i32, i32
  }
  func.func @transform_3(%arg0: i32) -> (i32, i32) {
    %c0_i32 = arith.constant 0 : i32
    %c0_i32_0 = arith.constant 0 : i32
    return %arg0, %c0_i32 : i32, i32
  }
}

</mosaic_0001>

<llo_original>
// kernel: tpu_custom_call.1
$region0: #{tpu_custom_call.1}
  #allocation0 [shape = 'u32[]', space=smem, size = 0x4, offset = 0x4, fixed_abs, tag = 'smem constant byte address 0x4 - core index']
  #allocation1 [shape = 'u32[144,128]{1,0:T(1,128)}', space=vmem, size = 0x12000, scoped, tag = 'internal scratch']
  %s0 = inlined_call_operand.vmem [shape: f32[16,7], index: 0, kind: input, shape index: {}]
  %s1 = inlined_call_operand.vmem [shape: f32[16,3], index: 1, kind: input, shape index: {}]
  %s2 = inlined_call_operand.vmem [shape: f32[16,5], index: 2, kind: input, shape index: {}]
  %s3 = inlined_call_operand.hbm [shape: f32[16,192], index: 3, kind: output, shape index: {}]
  %s4 = sld [smem:[#allocation0]]
  $region45: #{tpu_custom_call.1} parent=0
    _
  %s6 = ssub.s32 1, %s4
  %s7 = scalar_select 0, %s6, %s4
  $region1: #{tpu_custom_call.1} parent=0
    #allocation2 [shape = 'u8[16384]{0}', space=vmem, size = 0x4000, scoped, tag = 'output window, operand 0']
    #allocation3 [shape = 's32[2]{0}', space=sflag, size = 0x8, scoped, tag = 'scoped memory for tpu_custom_call.1']
    %8 = vsyncpa [#allocation3], 0
    %s9 = scalar_lea.sflag [#allocation3], 1
    %10 = vsyncpa %s9, 0
    loop: start=0, step=1, limit=4
    $region2: #{tpu_custom_call.1} parent=1 // loop_pre_header
      _
    $region3: #{tpu_custom_call.1} parent=1 // loop_header
      %s12 = sphi 0, %s16
      %p13 = scmp.ge.s32.totalorder %s12, 4
      %s22 = sphi 0, %s24
      %s25 = sphi 0, %s22
      %s26 = sphi 0, %s25
      %s42 = sphi 0, %s26
      %s48 = sphi 0, %s50
      %s51 = sphi 0, %s48
      %s52 = sphi 0, %s51
      %s68 = sphi 0, %s52
      %s74 = sphi 0, %s76
      %s77 = sphi 0, %s74
      %s78 = sphi 0, %s77
      %s94 = sphi 0, %s78
      %s100 = sphi 0, %s102
      %s103 = sphi 0, %s100
      %s104 = sphi 0, %s103
      %s120 = sphi 0, %s104
    $region4: #{tpu_custom_call.1} parent=1 // loop_header_branch
      %15 = sbr.rel (%p13) target = $region8
    $region5: #{tpu_custom_call.1} parent=1 // loop_body
      %s17 = ssub.s32 %s12, 1
      %s18 = ssub.s32 %s12, 2
      %s19 = sadd.s32 %s12, 1
      %s20 = ssub.s32 %s12, %s19
      %p21 = scmp.eq.s32.totalorder %s20, 0
      %s23 = sadd.s32 %s22, 1
      %s24 = scalar_select %p21, %s22, %s23
      %p27 = pneg %p21
      %p28 = scmp.eq.s32.totalorder %s12, 1
      %p29 = por %p27, %p28
      %p30 = scmp.ne.s32.totalorder %s22, %s25
      %p31 = scmp.eq.s32.totalorder %s12, 0
      %p32 = por %p30, %p31
      %p33 = scmp.ne.s32.totalorder %s22, %s25
      %p34 = scmp.eq.s32.totalorder %s17, 1
      %p35 = por %p33, %p34
      %p36 = scmp.ne.s32.totalorder %s25, %s26
      %p37 = scmp.eq.s32.totalorder %s17, 0
      %p38 = por %p36, %p37
      %p39 = scmp.ne.s32.totalorder %s25, %s26
      %p40 = scmp.eq.s32.totalorder %s18, 1
      %p41 = por %p39, %p40
      %p43 = scmp.ne.s32.totalorder %s26, %s42
      %p44 = scmp.eq.s32.totalorder %s18, 0
      %p45 = por %p43, %p44
      %s46 = ssub.s32 %s12, %s19
      %p47 = scmp.eq.s32.totalorder %s46, 0
      %s49 = sadd.s32 %s48, 1
      %s50 = scalar_select %p47, %s48, %s49
      %p53 = pneg %p47
      %p54 = scmp.eq.s32.totalorder %s12, 1
      %p55 = por %p53, %p54
      %p56 = scmp.ne.s32.totalorder %s48, %s51
      %p57 = scmp.eq.s32.totalorder %s12, 0
      %p58 = por %p56, %p57
      %p59 = scmp.ne.s32.totalorder %s48, %s51
      %p60 = scmp.eq.s32.totalorder %s17, 1
      %p61 = por %p59, %p60
      %p62 = scmp.ne.s32.totalorder %s51, %s52
      %p63 = scmp.eq.s32.totalorder %s17, 0
      %p64 = por %p62, %p63
      %p65 = scmp.ne.s32.totalorder %s51, %s52
      %p66 = scmp.eq.s32.totalorder %s18, 1
      %p67 = por %p65, %p66
      %p69 = scmp.ne.s32.totalorder %s52, %s68
      %p70 = scmp.eq.s32.totalorder %s18, 0
      %p71 = por %p69, %p70
      %s72 = ssub.s32 %s12, %s19
      %p73 = scmp.eq.s32.totalorder %s72, 0
      %s75 = sadd.s32 %s74, 1
      %s76 = scalar_select %p73, %s74, %s75
      %p79 = pneg %p73
      %p80 = scmp.eq.s32.totalorder %s12, 1
      %p81 = por %p79, %p80
      %p82 = scmp.ne.s32.totalorder %s74, %s77
      %p83 = scmp.eq.s32.totalorder %s12, 0
      %p84 = por %p82, %p83
      %p85 = scmp.ne.s32.totalorder %s74, %s77
      %p86 = scmp.eq.s32.totalorder %s17, 1
      %p87 = por %p85, %p86
      %p88 = scmp.ne.s32.totalorder %s77, %s78
      %p89 = scmp.eq.s32.totalorder %s17, 0
      %p90 = por %p88, %p89
      %p91 = scmp.ne.s32.totalorder %s77, %s78
      %p92 = scmp.eq.s32.totalorder %s18, 1
      %p93 = por %p91, %p92
      %p95 = scmp.ne.s32.totalorder %s78, %s94
      %p96 = scmp.eq.s32.totalorder %s18, 0
      %p97 = por %p95, %p96
      %s98 = ssub.s32 %s12, %s19
      %p99 = scmp.eq.s32.totalorder %s98, 0
      %s101 = sadd.s32 %s100, 1
      %s102 = scalar_select %p99, %s100, %s101
      %p105 = pneg %p99
      %p106 = scmp.eq.s32.totalorder %s12, 1
      %p107 = por %p105, %p106
      %p108 = scmp.ne.s32.totalorder %s100, %s103
      %p109 = scmp.eq.s32.totalorder %s12, 0
      %p110 = por %p108, %p109
      %p111 = scmp.ne.s32.totalorder %s100, %s103
      %p112 = scmp.eq.s32.totalorder %s17, 1
      %p113 = por %p111, %p112
      %p114 = scmp.ne.s32.totalorder %s103, %s104
      %p115 = scmp.eq.s32.totalorder %s17, 0
      %p116 = por %p114, %p115
      %p117 = scmp.ne.s32.totalorder %s103, %s104
      %p118 = scmp.eq.s32.totalorder %s18, 1
      %p119 = por %p117, %p118
      %p121 = scmp.ne.s32.totalorder %s104, %s120
      %p122 = scmp.eq.s32.totalorder %s18, 0
      %p123 = por %p121, %p122
      %p124 = scmp.le.s32.totalorder 1, %s12
      %p125 = scmp.lt.s32.totalorder %s12, 3
      %p126 = pnand %p124, %p125
      %p127 = pneg %p126
      // Predicated region
      $region9: #{tpu_custom_call.1} parent=5 // pred_check
        _
      $region10: #{tpu_custom_call.1} parent=5 // pred_check_branch
        %129 = sbr.rel (%p126) target = $region12
      $region11: #{tpu_custom_call.1} parent=5 // pred_region
        %s130 = ssub.s32 %s12, 1
      $region12: #{tpu_custom_call.1} parent=5 // pred_fallthru
        _
      %p131 = scmp.lt.s32.totalorder %s12, 2
      // Predicated region
      $region13: #{tpu_custom_call.1} parent=5 // pred_check
        %p132 = pneg %p131
      $region14: #{tpu_custom_call.1} parent=5 // pred_check_branch
        %134 = sbr.rel (%p132) target = $region16
      $region15: #{tpu_custom_call.1} parent=5 // pred_region
        // Predicated region
        $region17: #{tpu_custom_call.1} parent=15 // pred_check
          %p135 = pneg %p32
        $region18: #{tpu_custom_call.1} parent=15 // pred_check_branch
          %137 = sbr.rel (%p135) target = $region20
        $region19: #{tpu_custom_call.1} parent=15 // pred_region
          %p138 = scmp.lt.s32.totalorder %s12, 1
          %s139 = scalar_select %p138, %s12, 1
          %s140 = smul.addr %s139, 8
          %s141 = scalar_lea.vmem %s0, %s140
        $region20: #{tpu_custom_call.1} parent=15 // pred_fallthru
          _
        // Predicated region
        $region21: #{tpu_custom_call.1} parent=15 // pred_check
          %p142 = pneg %p58
        $region22: #{tpu_custom_call.1} parent=15 // pred_check_branch
          %144 = sbr.rel (%p142) target = $region24
        $region23: #{tpu_custom_call.1} parent=15 // pred_region
          %p145 = scmp.lt.s32.totalorder %s12, 1
          %s146 = scalar_select %p145, %s12, 1
          %s147 = smul.addr %s146, 8
          %s148 = scalar_lea.vmem %s1, %s147
        $region24: #{tpu_custom_call.1} parent=15 // pred_fallthru
          _
        // Predicated region
        $region25: #{tpu_custom_call.1} parent=15 // pred_check
          %p149 = pneg %p84
        $region26: #{tpu_custom_call.1} parent=15 // pred_check_branch
          %151 = sbr.rel (%p149) target = $region28
        $region27: #{tpu_custom_call.1} parent=15 // pred_region
          %p152 = scmp.lt.s32.totalorder %s12, 1
          %s153 = scalar_select %p152, %s12, 1
          %s154 = smul.addr %s153, 8
          %s155 = scalar_lea.vmem %s2, %s154
        $region28: #{tpu_custom_call.1} parent=15 // pred_fallthru
          _
      $region16: #{tpu_custom_call.1} parent=5 // pred_fallthru
        _
      %p156 = scmp.le.s32.totalorder 1, %s12
      %p157 = scmp.lt.s32.totalorder %s12, 3
      %p158 = pnand %p156, %p157
      %p159 = pneg %p158
      // Predicated region
      $region29: #{tpu_custom_call.1} parent=5 // pred_check
        _
      $region30: #{tpu_custom_call.1} parent=5 // pred_check_branch
        %161 = sbr.rel (%p158) target = $region32
      $region31: #{tpu_custom_call.1} parent=5 // pred_region
        %s162 = ssub.s32 %s12, 1
        %p163 = scmp.lt.s32.totalorder %s17, 1
        %s164 = scalar_select %p163, %s17, 1
        %s165 = smul.addr %s164, 8
        %s166 = scalar_lea.vmem %s0, %s165
        %p167 = pneg %p38
        %p168 = pneg %p35
        %p169 = scmp.lt.s32.totalorder %s17, 1
        %s170 = scalar_select %p169, %s17, 1
        %s171 = smul.addr %s170, 8
        %s172 = scalar_lea.vmem %s1, %s171
        %p173 = pneg %p64
        %p174 = pneg %p61
        %p175 = scmp.lt.s32.totalorder %s17, 1
        %s176 = scalar_select %p175, %s17, 1
        %s177 = smul.addr %s176, 8
        %s178 = scalar_lea.vmem %s2, %s177
        %p179 = pneg %p90
        %p180 = pneg %p87
        %p181 = pneg %p116
        %p182 = pneg %p113
        %s183 = sand.u32 %s103, 1
        %s184 = scalar_lea.sflag [#allocation3], %s183
        %s185 = sand.u32 %s103, 1
        %s186 = smul.addr %s185, 16
        %s187 = scalar_lea.vmem [#allocation2], %s186
        %p188 = scmp.lt.s32.totalorder %s17, 1
        %s189 = scalar_select %p188, %s17, 1
        %s190 = smul.addr %s189, 8
        %s191 = scalar_lea.vmem %s0, %s190
        %p192 = scmp.lt.s32.totalorder %s17, 1
        %s193 = scalar_select %p192, %s17, 1
        %s194 = smul.addr %s193, 8
        %s195 = scalar_lea.vmem %s1, %s194
        %p196 = scmp.lt.s32.totalorder %s17, 1
        %s197 = scalar_select %p196, %s17, 1
        %s198 = smul.addr %s197, 8
        %s199 = scalar_lea.vmem %s2, %s198
        %v200 = vld [vmem:[%s199] sm:$0xff]
        %202 = vrot.lane.b32.xlu0 %v200, 1
        %v203 = vpop.permute.xlu0 %202
        %vm205 = vcmask 7168
        %v206 = vsel %vm205, 1.0, %v203
        %v207 = vld [vmem:[%s195] sm:$0xff]
        %209 = vrot.lane.b32.xlu0 %v207, 1
        %v210 = vpop.permute.xlu0 %209
        %v212 = vsel %vm205, 1.0, %v210
        %v213 = vlaneseq
        %v214 = vshrl.u32 %v213, 7
        %v215 = vsub.s32 0, %v214
        %v216 = vrot.slane %v212, %v215
        %218 = vbcast.lane.b32.xlu0 %v216, 256
        %v219 = vpop.permute.xlu0 %218
        %v220 = vlaneseq
        %v221 = vshrl.u32 %v220, 7
        %v222 = vsub.s32 1, %v221
        %v223 = vrot.slane %v212, %v222
        %225 = vbcast.lane.b32.xlu0 %v223, 256
        %v226 = vpop.permute.xlu0 %225
        %v227 = vlaneseq
        %v228 = vshrl.u32 %v227, 7
        %v229 = vsub.s32 2, %v228
        %v230 = vrot.slane %v212, %v229
        %232 = vbcast.lane.b32.xlu0 %v230, 256
        %v233 = vpop.permute.xlu0 %232
        %v234 = vlaneseq
        %v235 = vshrl.u32 %v234, 7
        %v236 = vsub.s32 3, %v235
        %v237 = vrot.slane %v212, %v236
        %239 = vbcast.lane.b32.xlu0 %v237, 256
        %v240 = vpop.permute.xlu0 %239
        %v241 = vlaneseq
        %v242 = vshrl.u32 %v241, 7
        %v243 = vsub.s32 4, %v242
        %v244 = vrot.slane %v212, %v243
        %246 = vbcast.lane.b32.xlu0 %v244, 256
        %v247 = vpop.permute.xlu0 %246
        %v248 = vlaneseq
        %v249 = vshrl.u32 %v248, 7
        %v250 = vsub.s32 5, %v249
        %v251 = vrot.slane %v212, %v250
        %253 = vbcast.lane.b32.xlu0 %v251, 256
        %v254 = vpop.permute.xlu0 %253
        %v255 = vlaneseq
        %v256 = vshrl.u32 %v255, 7
        %v257 = vsub.s32 6, %v256
        %v258 = vrot.slane %v212, %v257
        %260 = vbcast.lane.b32.xlu0 %v258, 256
        %v261 = vpop.permute.xlu0 %260
        %v262 = vlaneseq
        %v263 = vshrl.u32 %v262, 7
        %v264 = vsub.s32 7, %v263
        %v265 = vrot.slane %v212, %v264
        %267 = vbcast.lane.b32.xlu0 %v265, 256
        %v268 = vpop.permute.xlu0 %267
        %v270 = vcombine.high %v206, %v206
        %v272 = vunpack.c.l.s4 1966171168
        %v273 = vunpack.c.0.s8 %v272
        %v274 = vlaneseq
        %v275 = vshrl.u32 %v274, 7
        %v276 = vsub.s32 %v273, %v275
        %v277 = vrot.slane %v206, %v276
        %v279 = vunpack.c.l.s4 1966171168
        %v280 = vunpack.c.0.s8 %v279
        %v281 = vlaneseq
        %v282 = vshrl.u32 %v281, 7
        %v283 = vsub.s32 %v280, %v282
        %v284 = vrot.slane %v270, %v283
        %v285 = vcombine.high %v277, %v277
        %v286 = vcombine.high %v284, %v284
        %v288 = vunpack.c.l.s4 1966171168
        %v289 = vunpack.c.0.s8 %v288
        %v290 = vlaneseq
        %v291 = vshrl.u32 %v290, 7
        %v292 = vsub.s32 %v289, %v291
        %v293 = vrot.slane %v277, %v292
        %v295 = vunpack.c.l.s4 1966171168
        %v296 = vunpack.c.0.s8 %v295
        %v297 = vlaneseq
        %v298 = vshrl.u32 %v297, 7
        %v299 = vsub.s32 %v296, %v298
        %v300 = vrot.slane %v284, %v299
        %v302 = vunpack.c.l.s4 1966171168
        %v303 = vunpack.c.0.s8 %v302
        %v304 = vlaneseq
        %v305 = vshrl.u32 %v304, 7
        %v306 = vsub.s32 %v303, %v305
        %v307 = vrot.slane %v285, %v306
        %v309 = vunpack.c.l.s4 1966171168
        %v310 = vunpack.c.0.s8 %v309
        %v311 = vlaneseq
        %v312 = vshrl.u32 %v311, 7
        %v313 = vsub.s32 %v310, %v312
        %v314 = vrot.slane %v286, %v313
        %v315 = vcombine.high %v293, %v293
        %v316 = vcombine.high %v300, %v300
        %v317 = vcombine.high %v307, %v307
        %v318 = vcombine.high %v314, %v314
        %v319 = vlaneseq
        %v320 = vshrl.u32 %v319, 7
        %v321 = vsub.s32 0, %v320
        %v322 = vrot.slane %v293, %v321
        %v323 = vlaneseq
        %v324 = vshrl.u32 %v323, 7
        %v325 = vsub.s32 0, %v324
        %v326 = vrot.slane %v307, %v325
        %v327 = vlaneseq
        %v328 = vshrl.u32 %v327, 7
        %v329 = vsub.s32 0, %v328
        %v330 = vrot.slane %v315, %v329
        %v331 = vlaneseq
        %v332 = vshrl.u32 %v331, 7
        %v333 = vsub.s32 0, %v332
        %v334 = vrot.slane %v317, %v333
        %v335 = vlaneseq
        %v336 = vshrl.u32 %v335, 7
        %v337 = vsub.s32 0, %v336
        %v338 = vrot.slane %v300, %v337
        %v339 = vlaneseq
        %v340 = vshrl.u32 %v339, 7
        %v341 = vsub.s32 0, %v340
        %v342 = vrot.slane %v314, %v341
        %v343 = vlaneseq
        %v344 = vshrl.u32 %v343, 7
        %v345 = vsub.s32 0, %v344
        %v346 = vrot.slane %v316, %v345
        %v347 = vlaneseq
        %v348 = vshrl.u32 %v347, 7
        %v349 = vsub.s32 0, %v348
        %v350 = vrot.slane %v318, %v349
        %v359 = vld [vmem:[%s191] sm:$0xff]
        %361 = vrot.lane.b32.xlu0 %v359, 1
        %v362 = vpop.permute.xlu0 %361
        %v364 = vsel %vm205, 1.0, %v362
        %v365 = vlaneseq
        %v366 = vshrl.u32 %v365, 7
        %v367 = vsub.s32 0, %v366
        %v368 = vrot.slane %v364, %v367
        %370 = vbcast.lane.b32.xlu0 %v368, 256
        %v371 = vpop.permute.xlu0 %370
        %v372 = vlaneseq
        %v373 = vshrl.u32 %v372, 7
        %v374 = vsub.s32 1, %v373
        %v375 = vrot.slane %v364, %v374
        %377 = vbcast.lane.b32.xlu0 %v375, 256
        %v378 = vpop.permute.xlu0 %377
        %v379 = vlaneseq
        %v380 = vshrl.u32 %v379, 7
        %v381 = vsub.s32 2, %v380
        %v382 = vrot.slane %v364, %v381
        %384 = vbcast.lane.b32.xlu0 %v382, 256
        %v385 = vpop.permute.xlu0 %384
        %v386 = vlaneseq
        %v387 = vshrl.u32 %v386, 7
        %v388 = vsub.s32 3, %v387
        %v389 = vrot.slane %v364, %v388
        %391 = vbcast.lane.b32.xlu0 %v389, 256
        %v392 = vpop.permute.xlu0 %391
        %v393 = vlaneseq
        %v394 = vshrl.u32 %v393, 7
        %v395 = vsub.s32 4, %v394
        %v396 = vrot.slane %v364, %v395
        %398 = vbcast.lane.b32.xlu0 %v396, 256
        %v399 = vpop.permute.xlu0 %398
        %v400 = vlaneseq
        %v401 = vshrl.u32 %v400, 7
        %v402 = vsub.s32 5, %v401
        %v403 = vrot.slane %v364, %v402
        %405 = vbcast.lane.b32.xlu0 %v403, 256
        %v406 = vpop.permute.xlu0 %405
        %v407 = vlaneseq
        %v408 = vshrl.u32 %v407, 7
        %v409 = vsub.s32 6, %v408
        %v410 = vrot.slane %v364, %v409
        %412 = vbcast.lane.b32.xlu0 %v410, 256
        %v413 = vpop.permute.xlu0 %412
        %v414 = vlaneseq
        %v415 = vshrl.u32 %v414, 7
        %v416 = vsub.s32 7, %v415
        %v417 = vrot.slane %v364, %v416
        %419 = vbcast.lane.b32.xlu0 %v417, 256
        %v420 = vpop.permute.xlu0 %419
        %v421 = vmul.f32 %v219, %v322
        %v423 = vunpack.c.l.s4 1983009808
        %v424 = vunpack.c.0.s8 %v423
        %v425 = vlaneseq
        %v426 = vshrl.u32 %v425, 7
        %v427 = vsub.s32 %v424, %v426
        %v428 = vrot.slane %v421, %v427
        %v429 = vcombine.high %v428, 0.0
        %v431 = vunpack.c.l.s4 1934713408
        %v432 = vunpack.c.0.s8 %v431
        %v433 = vlaneseq
        %v434 = vshrl.u32 %v433, 7
        %v435 = vsub.s32 %v432, %v434
        %v436 = vrot.slane %v428, %v435
        %v438 = vunpack.c.l.s4 1934713408
        %v439 = vunpack.c.0.s8 %v438
        %v440 = vlaneseq
        %v441 = vshrl.u32 %v440, 7
        %v442 = vsub.s32 %v439, %v441
        %v443 = vrot.slane %v429, %v442
        %v444 = vcombine.high %v436, 0.0
        %v445 = vcombine.high %v443, 0.0
        %v446 = vmul.f32 %v226, %v326
        %v448 = vunpack.c.l.s4 1983009808
        %v449 = vunpack.c.0.s8 %v448
        %v450 = vlaneseq
        %v451 = vshrl.u32 %v450, 7
        %v452 = vsub.s32 %v449, %v451
        %v453 = vrot.slane %v446, %v452
        %v454 = vcombine.high %v453, 0.0
        %v456 = vunpack.c.l.s4 1934713408
        %v457 = vunpack.c.0.s8 %v456
        %v458 = vlaneseq
        %v459 = vshrl.u32 %v458, 7
        %v460 = vsub.s32 %v457, %v459
        %v461 = vrot.slane %v453, %v460
        %v463 = vunpack.c.l.s4 1934713408
        %v464 = vunpack.c.0.s8 %v463
        %v465 = vlaneseq
        %v466 = vshrl.u32 %v465, 7
        %v467 = vsub.s32 %v464, %v466
        %v468 = vrot.slane %v454, %v467
        %v469 = vcombine.high %v461, 0.0
        %v470 = vcombine.high %v468, 0.0
        %v471 = vmul.f32 %v233, %v330
        %v473 = vunpack.c.l.s4 1983009808
        %v474 = vunpack.c.0.s8 %v473
        %v475 = vlaneseq
        %v476 = vshrl.u32 %v475, 7
        %v477 = vsub.s32 %v474, %v476
        %v478 = vrot.slane %v471, %v477
        %v479 = vcombine.high %v478, 0.0
        %v481 = vunpack.c.l.s4 1934713408
        %v482 = vunpack.c.0.s8 %v481
        %v483 = vlaneseq
        %v484 = vshrl.u32 %v483, 7
        %v485 = vsub.s32 %v482, %v484
        %v486 = vrot.slane %v478, %v485
        %v488 = vunpack.c.l.s4 1934713408
        %v489 = vunpack.c.0.s8 %v488
        %v490 = vlaneseq
        %v491 = vshrl.u32 %v490, 7
        %v492 = vsub.s32 %v489, %v491
        %v493 = vrot.slane %v479, %v492
        %v494 = vcombine.high %v486, 0.0
        %v495 = vcombine.high %v493, 0.0
        %v496 = vmul.f32 %v240, %v334
        %v498 = vunpack.c.l.s4 1983009808
        %v499 = vunpack.c.0.s8 %v498
        %v500 = vlaneseq
        %v501 = vshrl.u32 %v500, 7
        %v502 = vsub.s32 %v499, %v501
        %v503 = vrot.slane %v496, %v502
        %v504 = vcombine.high %v503, 0.0
        %v506 = vunpack.c.l.s4 1934713408
        %v507 = vunpack.c.0.s8 %v506
        %v508 = vlaneseq
        %v509 = vshrl.u32 %v508, 7
        %v510 = vsub.s32 %v507, %v509
        %v511 = vrot.slane %v503, %v510
        %v513 = vunpack.c.l.s4 1934713408
        %v514 = vunpack.c.0.s8 %v513
        %v515 = vlaneseq
        %v516 = vshrl.u32 %v515, 7
        %v517 = vsub.s32 %v514, %v516
        %v518 = vrot.slane %v504, %v517
        %v519 = vcombine.high %v511, 0.0
        %v520 = vcombine.high %v518, 0.0
        %v521 = vmul.f32 %v247, %v338
        %v523 = vunpack.c.l.s4 1983009808
        %v524 = vunpack.c.0.s8 %v523
        %v525 = vlaneseq
        %v526 = vshrl.u32 %v525, 7
        %v527 = vsub.s32 %v524, %v526
        %v528 = vrot.slane %v521, %v527
        %v529 = vcombine.high %v528, 0.0
        %v531 = vunpack.c.l.s4 1934713408
        %v532 = vunpack.c.0.s8 %v531
        %v533 = vlaneseq
        %v534 = vshrl.u32 %v533, 7
        %v535 = vsub.s32 %v532, %v534
        %v536 = vrot.slane %v528, %v535
        %v538 = vunpack.c.l.s4 1934713408
        %v539 = vunpack.c.0.s8 %v538
        %v540 = vlaneseq
        %v541 = vshrl.u32 %v540, 7
        %v542 = vsub.s32 %v539, %v541
        %v543 = vrot.slane %v529, %v542
        %v544 = vcombine.high %v536, 0.0
        %v545 = vcombine.high %v543, 0.0
        %v546 = vmul.f32 %v254, %v342
        %v548 = vunpack.c.l.s4 1983009808
        %v549 = vunpack.c.0.s8 %v548
        %v550 = vlaneseq
        %v551 = vshrl.u32 %v550, 7
        %v552 = vsub.s32 %v549, %v551
        %v553 = vrot.slane %v546, %v552
        %v554 = vcombine.high %v553, 0.0
        %v556 = vunpack.c.l.s4 1934713408
        %v557 = vunpack.c.0.s8 %v556
        %v558 = vlaneseq
        %v559 = vshrl.u32 %v558, 7
        %v560 = vsub.s32 %v557, %v559
        %v561 = vrot.slane %v553, %v560
        %v563 = vunpack.c.l.s4 1934713408
        %v564 = vunpack.c.0.s8 %v563
        %v565 = vlaneseq
        %v566 = vshrl.u32 %v565, 7
        %v567 = vsub.s32 %v564, %v566
        %v568 = vrot.slane %v554, %v567
        %v569 = vcombine.high %v561, 0.0
        %v570 = vcombine.high %v568, 0.0
        %v571 = vmul.f32 %v261, %v346
        %v573 = vunpack.c.l.s4 1983009808
        %v574 = vunpack.c.0.s8 %v573
        %v575 = vlaneseq
        %v576 = vshrl.u32 %v575, 7
        %v577 = vsub.s32 %v574, %v576
        %v578 = vrot.slane %v571, %v577
        %v579 = vcombine.high %v578, 0.0
        %v581 = vunpack.c.l.s4 1934713408
        %v582 = vunpack.c.0.s8 %v581
        %v583 = vlaneseq
        %v584 = vshrl.u32 %v583, 7
        %v585 = vsub.s32 %v582, %v584
        %v586 = vrot.slane %v578, %v585
        %v588 = vunpack.c.l.s4 1934713408
        %v589 = vunpack.c.0.s8 %v588
        %v590 = vlaneseq
        %v591 = vshrl.u32 %v590, 7
        %v592 = vsub.s32 %v589, %v591
        %v593 = vrot.slane %v579, %v592
        %v594 = vcombine.high %v586, 0.0
        %v595 = vcombine.high %v593, 0.0
        %v596 = vmul.f32 %v268, %v350
        %v598 = vunpack.c.l.s4 1983009808
        %v599 = vunpack.c.0.s8 %v598
        %v600 = vlaneseq
        %v601 = vshrl.u32 %v600, 7
        %v602 = vsub.s32 %v599, %v601
        %v603 = vrot.slane %v596, %v602
        %v604 = vcombine.high %v603, 0.0
        %v606 = vunpack.c.l.s4 1934713408
        %v607 = vunpack.c.0.s8 %v606
        %v608 = vlaneseq
        %v609 = vshrl.u32 %v608, 7
        %v610 = vsub.s32 %v607, %v609
        %v611 = vrot.slane %v603, %v610
        %v613 = vunpack.c.l.s4 1934713408
        %v614 = vunpack.c.0.s8 %v613
        %v615 = vlaneseq
        %v616 = vshrl.u32 %v615, 7
        %v617 = vsub.s32 %v614, %v616
        %v618 = vrot.slane %v604, %v617
        %v619 = vcombine.high %v611, 0.0
        %v620 = vcombine.high %v618, 0.0
        %629 = vrot.lane.b32.xlu0 %v444, 6
        %v630 = vpop.permute.xlu0 %629
        %631 = vrot.lane.b32.xlu0 %v469, 6
        %v632 = vpop.permute.xlu0 %631
        %633 = vrot.lane.b32.xlu0 %v494, 6
        %v634 = vpop.permute.xlu0 %633
        %635 = vrot.lane.b32.xlu0 %v519, 6
        %v636 = vpop.permute.xlu0 %635
        %637 = vrot.lane.b32.xlu0 %v544, 6
        %v638 = vpop.permute.xlu0 %637
        %639 = vrot.lane.b32.xlu0 %v569, 6
        %v640 = vpop.permute.xlu0 %639
        %641 = vrot.lane.b32.xlu0 %v594, 6
        %v642 = vpop.permute.xlu0 %641
        %643 = vrot.lane.b32.xlu0 %v619, 6
        %v644 = vpop.permute.xlu0 %643
        %661 = vrot.lane.b32.xlu0 %v443, 12
        %v662 = vpop.permute.xlu0 %661
        %663 = vrot.lane.b32.xlu0 %v468, 12
        %v664 = vpop.permute.xlu0 %663
        %665 = vrot.lane.b32.xlu0 %v493, 12
        %v666 = vpop.permute.xlu0 %665
        %667 = vrot.lane.b32.xlu0 %v518, 12
        %v668 = vpop.permute.xlu0 %667
        %669 = vrot.lane.b32.xlu0 %v543, 12
        %v670 = vpop.permute.xlu0 %669
        %671 = vrot.lane.b32.xlu0 %v568, 12
        %v672 = vpop.permute.xlu0 %671
        %673 = vrot.lane.b32.xlu0 %v593, 12
        %v674 = vpop.permute.xlu0 %673
        %675 = vrot.lane.b32.xlu0 %v618, 12
        %v676 = vpop.permute.xlu0 %675
        %693 = vrot.lane.b32.xlu0 %v445, 18
        %v694 = vpop.permute.xlu0 %693
        %695 = vrot.lane.b32.xlu0 %v470, 18
        %v696 = vpop.permute.xlu0 %695
        %697 = vrot.lane.b32.xlu0 %v495, 18
        %v698 = vpop.permute.xlu0 %697
        %699 = vrot.lane.b32.xlu0 %v520, 18
        %v700 = vpop.permute.xlu0 %699
        %701 = vrot.lane.b32.xlu0 %v545, 18
        %v702 = vpop.permute.xlu0 %701
        %703 = vrot.lane.b32.xlu0 %v570, 18
        %v704 = vpop.permute.xlu0 %703
        %705 = vrot.lane.b32.xlu0 %v595, 18
        %v706 = vpop.permute.xlu0 %705
        %707 = vrot.lane.b32.xlu0 %v620, 18
        %v708 = vpop.permute.xlu0 %707
        %vm717 = vcmask 48128
        %v718 = vsel %vm717, %v436, %v630
        %v719 = vsel %vm717, %v461, %v632
        %v720 = vsel %vm717, %v486, %v634
        %v721 = vsel %vm717, %v511, %v636
        %v722 = vsel %vm717, %v536, %v638
        %v723 = vsel %vm717, %v561, %v640
        %v724 = vsel %vm717, %v586, %v642
        %v725 = vsel %vm717, %v611, %v644
        %vm726 = vcmask 97280
        %v727 = vsel %vm726, %v718, %v662
        %v728 = vsel %vm726, %v719, %v664
        %v729 = vsel %vm726, %v720, %v666
        %v730 = vsel %vm726, %v721, %v668
        %v731 = vsel %vm726, %v722, %v670
        %v732 = vsel %vm726, %v723, %v672
        %v733 = vsel %vm726, %v724, %v674
        %v734 = vsel %vm726, %v725, %v676
        %vm735 = vcmask 146432
        %v736 = vsel %vm735, %v727, %v694
        %v737 = vsel %vm735, %v728, %v696
        %v738 = vsel %vm735, %v729, %v698
        %v739 = vsel %vm735, %v730, %v700
        %v740 = vsel %vm735, %v731, %v702
        %v741 = vsel %vm735, %v732, %v704
        %v742 = vsel %vm735, %v733, %v706
        %v743 = vsel %vm735, %v734, %v708
        %v744 = vlaneseq
        %v745 = vshrl.u32 %v744, 7
        %v746 = vsub.s32 0, %v745
        %v747 = vrot.slane %v736, %v746
        %v748 = vlaneseq
        %v749 = vshrl.u32 %v748, 7
        %v750 = vsub.s32 0, %v749
        %v751 = vrot.slane %v737, %v750
        %v752 = vlaneseq
        %v753 = vshrl.u32 %v752, 7
        %v754 = vsub.s32 0, %v753
        %v755 = vrot.slane %v738, %v754
        %v756 = vlaneseq
        %v757 = vshrl.u32 %v756, 7
        %v758 = vsub.s32 0, %v757
        %v759 = vrot.slane %v739, %v758
        %v760 = vlaneseq
        %v761 = vshrl.u32 %v760, 7
        %v762 = vsub.s32 0, %v761
        %v763 = vrot.slane %v740, %v762
        %v764 = vlaneseq
        %v765 = vshrl.u32 %v764, 7
        %v766 = vsub.s32 0, %v765
        %v767 = vrot.slane %v741, %v766
        %v768 = vlaneseq
        %v769 = vshrl.u32 %v768, 7
        %v770 = vsub.s32 0, %v769
        %v771 = vrot.slane %v742, %v770
        %v772 = vlaneseq
        %v773 = vshrl.u32 %v772, 7
        %v774 = vsub.s32 0, %v773
        %v775 = vrot.slane %v743, %v774
        %v776 = vmul.f32 %v371, %v747
        %v777 = vmul.f32 %v378, %v751
        %v778 = vmul.f32 %v385, %v755
        %v779 = vmul.f32 %v392, %v759
        %v780 = vmul.f32 %v399, %v763
        %v781 = vmul.f32 %v406, %v767
        %v782 = vmul.f32 %v413, %v771
        %v783 = vmul.f32 %v420, %v775
        %v784 = vcombine.low %v776, %v778
        %v785 = vcombine.high %v776, %v778
        %v787 = vunpack.c.l.s4 1983009808
        %v788 = vunpack.c.0.s8 %v787
        %v789 = vlaneseq
        %v790 = vshrl.u32 %v789, 7
        %v791 = vsub.s32 %v788, %v790
        %v792 = vrot.slane %v784, %v791
        %v794 = vunpack.c.l.s4 1983009808
        %v795 = vunpack.c.0.s8 %v794
        %v796 = vlaneseq
        %v797 = vshrl.u32 %v796, 7
        %v798 = vsub.s32 %v795, %v797
        %v799 = vrot.slane %v785, %v798
        %v800 = vcombine.low %v777, %v779
        %v801 = vcombine.high %v777, %v779
        %v803 = vunpack.c.l.s4 1983009808
        %v804 = vunpack.c.0.s8 %v803
        %v805 = vlaneseq
        %v806 = vshrl.u32 %v805, 7
        %v807 = vsub.s32 %v804, %v806
        %v808 = vrot.slane %v800, %v807
        %v810 = vunpack.c.l.s4 1983009808
        %v811 = vunpack.c.0.s8 %v810
        %v812 = vlaneseq
        %v813 = vshrl.u32 %v812, 7
        %v814 = vsub.s32 %v811, %v813
        %v815 = vrot.slane %v801, %v814
        %v816 = vcombine.low %v780, %v782
        %v817 = vcombine.high %v780, %v782
        %v819 = vunpack.c.l.s4 1983009808
        %v820 = vunpack.c.0.s8 %v819
        %v821 = vlaneseq
        %v822 = vshrl.u32 %v821, 7
        %v823 = vsub.s32 %v820, %v822
        %v824 = vrot.slane %v816, %v823
        %v826 = vunpack.c.l.s4 1983009808
        %v827 = vunpack.c.0.s8 %v826
        %v828 = vlaneseq
        %v829 = vshrl.u32 %v828, 7
        %v830 = vsub.s32 %v827, %v829
        %v831 = vrot.slane %v817, %v830
        %v832 = vcombine.low %v781, %v783
        %v833 = vcombine.high %v781, %v783
        %v835 = vunpack.c.l.s4 1983009808
        %v836 = vunpack.c.0.s8 %v835
        %v837 = vlaneseq
        %v838 = vshrl.u32 %v837, 7
        %v839 = vsub.s32 %v836, %v838
        %v840 = vrot.slane %v832, %v839
        %v842 = vunpack.c.l.s4 1983009808
        %v843 = vunpack.c.0.s8 %v842
        %v844 = vlaneseq
        %v845 = vshrl.u32 %v844, 7
        %v846 = vsub.s32 %v843, %v845
        %v847 = vrot.slane %v833, %v846
        %v848 = vcombine.low %v792, %v808
        %v849 = vcombine.high %v792, %v808
        %v851 = vunpack.c.l.s4 1934713408
        %v852 = vunpack.c.0.s8 %v851
        %v853 = vlaneseq
        %v854 = vshrl.u32 %v853, 7
        %v855 = vsub.s32 %v852, %v854
        %v856 = vrot.slane %v848, %v855
        %v858 = vunpack.c.l.s4 1934713408
        %v859 = vunpack.c.0.s8 %v858
        %v860 = vlaneseq
        %v861 = vshrl.u32 %v860, 7
        %v862 = vsub.s32 %v859, %v861
        %v863 = vrot.slane %v849, %v862
        %v864 = vcombine.low %v799, %v815
        %v865 = vcombine.high %v799, %v815
        %v867 = vunpack.c.l.s4 1934713408
        %v868 = vunpack.c.0.s8 %v867
        %v869 = vlaneseq
        %v870 = vshrl.u32 %v869, 7
        %v871 = vsub.s32 %v868, %v870
        %v872 = vrot.slane %v864, %v871
        %v874 = vunpack.c.l.s4 1934713408
        %v875 = vunpack.c.0.s8 %v874
        %v876 = vlaneseq
        %v877 = vshrl.u32 %v876, 7
        %v878 = vsub.s32 %v875, %v877
        %v879 = vrot.slane %v865, %v878
        %v880 = vcombine.low %v824, %v840
        %v881 = vcombine.high %v824, %v840
        %v883 = vunpack.c.l.s4 1934713408
        %v884 = vunpack.c.0.s8 %v883
        %v885 = vlaneseq
        %v886 = vshrl.u32 %v885, 7
        %v887 = vsub.s32 %v884, %v886
        %v888 = vrot.slane %v880, %v887
        %v890 = vunpack.c.l.s4 1934713408
        %v891 = vunpack.c.0.s8 %v890
        %v892 = vlaneseq
        %v893 = vshrl.u32 %v892, 7
        %v894 = vsub.s32 %v891, %v893
        %v895 = vrot.slane %v881, %v894
        %v896 = vcombine.low %v831, %v847
        %v897 = vcombine.high %v831, %v847
        %v899 = vunpack.c.l.s4 1934713408
        %v900 = vunpack.c.0.s8 %v899
        %v901 = vlaneseq
        %v902 = vshrl.u32 %v901, 7
        %v903 = vsub.s32 %v900, %v902
        %v904 = vrot.slane %v896, %v903
        %v906 = vunpack.c.l.s4 1934713408
        %v907 = vunpack.c.0.s8 %v906
        %v908 = vlaneseq
        %v909 = vshrl.u32 %v908, 7
        %v910 = vsub.s32 %v907, %v909
        %v911 = vrot.slane %v897, %v910
        %v912 = vcombine.low %v856, %v888
        %v913 = vcombine.high %v856, %v888
        %v914 = vcombine.low %v863, %v895
        %v915 = vcombine.high %v863, %v895
        %v916 = vcombine.low %v872, %v904
        %v917 = vcombine.high %v872, %v904
        %v918 = vcombine.low %v879, %v911
        %v919 = vcombine.high %v879, %v911
        %921 = vrot.lane.b32.xlu0 %v913, 24
        %v922 = vpop.permute.xlu0 %921
        %925 = vrot.lane.b32.xlu0 %v914, 48
        %v926 = vpop.permute.xlu0 %925
        %929 = vrot.lane.b32.xlu0 %v915, 72
        %v930 = vpop.permute.xlu0 %929
        %933 = vrot.lane.b32.xlu0 %v916, 96
        %v934 = vpop.permute.xlu0 %933
        %937 = vrot.lane.b32.xlu0 %v917, 120
        %v938 = vpop.permute.xlu0 %937
        %941 = vrot.lane.b32.xlu0 %v918, 16
        %v942 = vpop.permute.xlu0 %941
        %945 = vrot.lane.b32.xlu0 %v919, 40
        %v946 = vpop.permute.xlu0 %945
        %vm948 = vcmask 195584
        %v949 = vsel %vm948, %v912, %v922
        %vm950 = vcmask 392192
        %v951 = vsel %vm950, %v949, %v926
        %vm952 = vcmask 588800
        %v953 = vsel %vm952, %v951, %v930
        %vm954 = vcmask 785408
        %v955 = vsel %vm954, %v953, %v934
        %vm956 = vcmask 982016
        %v957 = vsel %vm956, %v955, %v938
        %vm958 = vcmask 130048
        %v959 = vsel %vm958, %v938, %v942
        %vm960 = vcmask 326656
        %v961 = vsel %vm960, %v959, %v946
        %962 = vst [vmem:[%s187] sm:$0xff] %v957
        %vm963 = vcmask 523264
        %964 = vst.msk [vmem:[%s187 + $0x8] sm:$0xff] %vm963, %v961
        %s965 = sand.u32 %s103, 1
        %s966 = scalar_lea.sflag [#allocation3], %s965
        %s967 = sand.u32 %s103, 1
        %s968 = smul.addr %s967, 16
        %s969 = scalar_lea.vmem [#allocation2], %s968
        // Predicated region
        $region33: #{tpu_custom_call.1} parent=31 // pred_check
          %p970 = pneg %p113
        $region34: #{tpu_custom_call.1} parent=31 // pred_check_branch
          %972 = sbr.rel (%p970) target = $region36
        $region35: #{tpu_custom_call.1} parent=31 // pred_region
          %s974 = ssub.s32 256, 256
          %975 = vsyncadd %s966, %s974
          %s976 = smul.addr %s17, 2
          %s977 = smul.addr %s976, 128
          %s978 = scalar_lea.hbm %s3, %s977
          %s980 = sshll.u32 %s969, 4
          %s981 = int_to_ptr.vmem [resolvable:$true] %s980
          %983 = dma.vmem_to_hbm [thread:$0]  %s981, 256, %s978, %s966
        $region36: #{tpu_custom_call.1} parent=31 // pred_fallthru
          _
      $region32: #{tpu_custom_call.1} parent=5 // pred_fallthru
        _
      %p984 = scmp.le.s32.totalorder 2, %s12
      // Predicated region
      $region37: #{tpu_custom_call.1} parent=5 // pred_check
        %p985 = pneg %p984
      $region38: #{tpu_custom_call.1} parent=5 // pred_check_branch
        %987 = sbr.rel (%p985) target = $region40
      $region39: #{tpu_custom_call.1} parent=5 // pred_region
        %s988 = ssub.s32 %s12, 2
        // Predicated region
        $region41: #{tpu_custom_call.1} parent=39 // pred_check
          %p989 = pneg %p119
        $region42: #{tpu_custom_call.1} parent=39 // pred_check_branch
          %991 = sbr.rel (%p989) target = $region44
        $region43: #{tpu_custom_call.1} parent=39 // pred_region
          %s992 = sand.u32 %s104, 1
          %s993 = scalar_lea.sflag [#allocation3], %s992
          %s994 = sand.u32 %s104, 1
          %s995 = smul.addr %s994, 16
          %s996 = scalar_lea.vmem [#allocation2], %s995
          %997 = dma.done %s993, 256
        $region44: #{tpu_custom_call.1} parent=39 // pred_fallthru
          _
      $region40: #{tpu_custom_call.1} parent=5 // pred_fallthru
        _
    $region6: #{tpu_custom_call.1} parent=1 // loop_footer
      %s16 = sadd.s32 1, %s12
    $region7: #{tpu_custom_call.1} parent=1 // loop_footer_branch
      %11 = sbr.rel target = $region3
    $region8: #{tpu_custom_call.1} parent=1 // loop_exit
      _
    %998 = vsyncpa [#allocation3], 1
    %s999 = scalar_lea.sflag [#allocation3], 1
    %1000 = vsyncpa %s999, 1

</llo_original>
